<compile_context>
chip_gen: v7x
topology: tpu7x:2x2x1
jax: 0.10.0
libtpu: 0.0.40
codegen_flags: <defaults>
</compile_context>

<pallas_src>
import functools
import math

import jax
import jax.numpy as jnp
from jax import lax
from jax.experimental import pallas as pl
from jax.experimental.pallas import tpu as pltpu


# ----------------------------- Pallas kernel ---------------------------------

def _residual_kernel(x_ref, s1_ref, t1_ref, w1_ref, t2_ref, w2_ref, b2_ref,
                     o_ref, hpad_ref, *, dilation, kernel_size, left_pad,
                     mxu_dtype):
    """One grid step processes NB batch rows in the native (C, L) layout.

    x_ref : (NB, C, L)   input slab, PyTorch NCL layout
    s1/t1 : (C, 1)       folded BN1 scale / shift (lane broadcast)
    w1    : (B, K*C)     im2col conv1 weights with BN2 scale folded in
    t2    : (B, 1)       folded (BN2 shift + conv1 bias * BN2 scale)
    w2    : (C, B)       1x1 conv weights
    b2    : (C, 1)       conv2 bias
    o_ref : (NB, C, L)   output slab
    hpad  : (NB, C, L + dilation*(K-1))  zero-padded activation scratch
    """
    NB, C, L = x_ref.shape
    K = kernel_size
    total = dilation * (K - 1)
    right_pad = total - left_pad

    s1 = s1_ref[...]                       # (C, 1)
    t1 = t1_ref[...]                       # (C, 1)
    w1 = w1_ref[...]                       # (B, K*C)  already mxu_dtype
    t2 = t2_ref[...]                       # (B, 1)
    w2 = w2_ref[...]                       # (C, B)    already mxu_dtype
    b2 = b2_ref[...]                       # (C, 1)

    # Zero only the pad borders (a few lanes), not the whole scratch.
    if left_pad > 0:
        hpad_ref[:, :, :left_pad] = jnp.zeros((NB, C, left_pad), jnp.float32)
    if right_pad > 0:
        hpad_ref[:, :, left_pad + L:] = jnp.zeros((NB, C, right_pad), jnp.float32)

    for n in range(NB):                    # static loop, NB is small (default 1)
        x = x_ref[n]                                            # (C, L) f32
        # BN1 (folded) + ReLU: pure VPU, (C,1) broadcast over lanes, no transpose.
        h = jnp.maximum(x * s1 + t1, 0.0)
        hpad_ref[n, :, left_pad:left_pad + L] = h
        hp = hpad_ref[n]                                        # (C, L + total)

        # im2col: K lane-shifted views stacked along sublanes -> (K*C, L),
        # then a single MXU matmul with contraction depth K*C.
        him2col = jnp.concatenate(
            [hp[:, k * dilation:k * dilation + L] for k in range(K)], axis=0)

        acc = jnp.dot(w1, him2col.astype(mxu_dtype),
                      preferred_element_type=jnp.float32)        # (B, L) f32
        # BN2 shift (+ conv1 bias) + ReLU.
        u = jnp.maximum(acc + t2, 0.0)                           # (B, L) f32
        # 1x1 conv2 + bias (length stays on lanes).
        y = jnp.dot(w2, u.astype(mxu_dtype),
                    preferred_element_type=jnp.float32) + b2     # (C, L) f32
        # Residual add in the original (C, L) layout — no transpose.
        o_ref[n] = x + y


# ------------------------------- wrapper --------------------------------------

def residual_layer_pallas(x_ncl, folded_params, *, dilation, kernel_size,
                          batch_block=1, mxu_dtype=jnp.float32):
    """x_ncl: (N, C, L) f32 in PyTorch layout.  Returns (N, C, L) f32.

    batch_block: batch rows per grid step.  Default 1 -> grid=(N,), so BlockSpec
                 double-buffering overlaps HBM DMA with compute and both v7x
                 TensorCores get work (dimension_semantics=("parallel",)).
    mxu_dtype:   set to jnp.bfloat16 on v6e/v7x when the accuracy budget allows
                 (f32 accumulation is kept either way); default f32 for the 1e-4 check.
    """
    N, C, L = x_ncl.shape
    s1, t1, w1f, t2f, w2f, b2c = folded_params
    assert N % batch_block == 0
    NB = batch_block
    total = dilation * (kernel_size - 1)
    left_pad = total // 2                    # PyTorch padding='same' left pad

    w1f = w1f.astype(mxu_dtype)
    w2f = w2f.astype(mxu_dtype)

    kern = functools.partial(_residual_kernel, dilation=dilation,
                             kernel_size=kernel_size, left_pad=left_pad,
                             mxu_dtype=mxu_dtype)

    def const_spec(arr):
        nd = arr.ndim
        return pl.BlockSpec(arr.shape, lambda i, _nd=nd: (0,) * _nd)

    return pl.pallas_call(
        kern,
        out_shape=jax.ShapeDtypeStruct((N, C, L), jnp.float32),
        grid_spec=pltpu.PrefetchScalarGridSpec(
            num_scalar_prefetch=0,
            grid=(N // NB,),
            in_specs=[
                pl.BlockSpec((NB, C, L), lambda i: (i, 0, 0)),   # x
                const_spec(s1), const_spec(t1), const_spec(w1f),
                const_spec(t2f), const_spec(w2f), const_spec(b2c),
            ],
            out_specs=pl.BlockSpec((NB, C, L), lambda i: (i, 0, 0)),
            scratch_shapes=[pltpu.VMEM((NB, C, L + total), jnp.float32)],
        ),
        compiler_params=pltpu.CompilerParams(
            dimension_semantics=("parallel",)),
    )(x_ncl, s1, t1, w1f, t2f, w2f, b2c)


# --------------------------- pure-JAX reference --------------------------------

def residual_layer_ref(x_ncl, raw_params, *, dilation, kernel_size):
    """Reference in PyTorch NCL layout with lax.conv_general_dilated (eval-mode BN)."""
    (g1, be1, m1, v1, W1, b1, g2, be2, m2, v2, W2, b2) = raw_params
    eps = 1e-5

    def bn(x, g, be, m, v):
        return (x - m[None, :, None]) / jnp.sqrt(v + eps)[None, :, None] \
               * g[None, :, None] + be[None, :, None]

    h = jnp.maximum(bn(x_ncl, g1, be1, m1, v1), 0.0)
    total = dilation * (kernel_size - 1)
    lp, rp = total // 2, total - total // 2
    u = lax.conv_general_dilated(h, W1, window_strides=(1,), padding=[(lp, rp)],
                                 rhs_dilation=(dilation,),
                                 dimension_numbers=('NCH', 'OIH', 'NCH'))
    u = u + b1[None, :, None]
    u = jnp.maximum(bn(u, g2, be2, m2, v2), 0.0)
    y = lax.conv_general_dilated(u, W2, window_strides=(1,), padding=[(0, 0)],
                                 dimension_numbers=('NCH', 'OIH', 'NCH'))
    y = y + b2[None, :, None]
    return x_ncl + y


# --------------------------------- main ----------------------------------------

if __name__ == "__main__":
    # Module hyper-parameters (mirror ResidualLayer.__init__)
    layer_index = 1
    first_dilated_layer = 1
    dilation_rate = 2
    resnet_bottleneck_factor = 0.5
    filters = 32
    kernel_size = 3

    shifted_layer_index = layer_index - first_dilated_layer + 1
    dilation = max(1, dilation_rate ** shifted_layer_index)          # -> 2
    bottleneck = math.floor(resnet_bottleneck_factor * filters)      # -> 16

    N, C, L = 2, filters, 16
    eps = 1e-5

    key = jax.random.PRNGKey(0)
    ks = jax.random.split(key, 16)

    # Deterministic synthetic parameters (BN params, running stats, conv weights/biases)
    g1 = jax.random.uniform(ks[0], (C,), jnp.float32, 0.5, 1.5)
    be1 = 0.1 * jax.random.normal(ks[1], (C,), jnp.float32)
    m1 = 0.1 * jax.random.normal(ks[2], (C,), jnp.float32)
    v1 = jax.random.uniform(ks[3], (C,), jnp.float32, 0.5, 1.5)
    W1 = jax.random.normal(ks[4], (bottleneck, C, kernel_size), jnp.float32) / math.sqrt(C * kernel_size)
    b1 = 0.01 * jax.random.normal(ks[5], (bottleneck,), jnp.float32)
    g2 = jax.random.uniform(ks[6], (bottleneck,), jnp.float32, 0.5, 1.5)
    be2 = 0.1 * jax.random.normal(ks[7], (bottleneck,), jnp.float32)
    m2 = 0.1 * jax.random.normal(ks[8], (bottleneck,), jnp.float32)
    v2 = jax.random.uniform(ks[9], (bottleneck,), jnp.float32, 0.5, 1.5)
    W2 = jax.random.normal(ks[10], (C, bottleneck, 1), jnp.float32) / math.sqrt(bottleneck)
    b2 = 0.01 * jax.random.normal(ks[11], (C,), jnp.float32)

    # Input in PyTorch layout (N, C, L) — fed directly to the kernel, no wrapper transposes.
    x_ncl = jax.random.normal(ks[12], (N, C, L), jnp.float32)

    # Fold eval-mode BN1 / BN2 and the conv1 bias into the kernel parameters.
    inv1 = g1 / jnp.sqrt(v1 + eps)
    s1 = inv1.reshape(C, 1)                                # (C, 1) lane-broadcast scale
    t1 = (be1 - m1 * inv1).reshape(C, 1)                   # (C, 1) lane-broadcast shift

    inv2 = g2 / jnp.sqrt(v2 + eps)                         # BN2 scale
    bn2_shift = be2 - m2 * inv2                            # BN2 shift
    W1_scaled = W1 * inv2[:, None, None]                   # (B, C, K) with BN2 scale folded
    # im2col weight: w1f[b, k*C + c] = W1_scaled[b, c, k]
    w1f = jnp.transpose(W1_scaled, (0, 2, 1)).reshape(bottleneck, kernel_size * C)
    t2f = (bn2_shift + b1 * inv2).reshape(bottleneck, 1)   # (B, 1)
    w2f = W2[:, :, 0]                                      # (C, B) — already weight-side layout
    b2c = b2.reshape(C, 1)                                 # (C, 1)

    folded = (s1, t1, w1f, t2f, w2f, b2c)

    # Default: grid over batch (2 steps) so DMA-in/out overlaps compute; "parallel"
    # semantics lets both v7x TensorCores take a slice.
    out = residual_layer_pallas(x_ncl, folded, dilation=dilation, kernel_size=kernel_size)
    out = jax.block_until_ready(out)

    # Larger batch block per step (single grid step) — exercises the multi-row path.
    out2 = residual_layer_pallas(x_ncl, folded, dilation=dilation, kernel_size=kernel_size,
                                 batch_block=2)
    out2 = jax.block_until_ready(out2)

    # Check against pure-JAX reference of the PyTorch forward (eval mode).
    raw = (g1, be1, m1, v1, W1, b1, g2, be2, m2, v2, W2, b2)
    ref = residual_layer_ref(x_ncl, raw, dilation=dilation, kernel_size=kernel_size)
    ref = jax.block_until_ready(ref)

    assert out.shape == (N, C, L)
    assert jnp.allclose(out, ref, atol=1e-4, rtol=1e-4), \
        f"max abs err {jnp.max(jnp.abs(out - ref))}"
    assert jnp.allclose(out2, ref, atol=1e-4, rtol=1e-4), \
        f"max abs err (batch_block=2) {jnp.max(jnp.abs(out2 - ref))}"

    print("KERNEL_OK")
</pallas_src>

<mosaic_0001>
module attributes {stable_mosaic.version = 11 : i64} {
  func.func @_residual_kernel(%arg0: i32, %arg1: memref<1x32x16xf32, #tpu.memory_space<vmem>>, %arg2: memref<32x1xf32, #tpu.memory_space<vmem>>, %arg3: memref<32x1xf32, #tpu.memory_space<vmem>>, %arg4: memref<16x96xf32, #tpu.memory_space<vmem>>, %arg5: memref<16x1xf32, #tpu.memory_space<vmem>>, %arg6: memref<32x16xf32, #tpu.memory_space<vmem>>, %arg7: memref<32x1xf32, #tpu.memory_space<vmem>>, %arg8: memref<1x32x16xf32, #tpu.memory_space<vmem>>, %arg9: memref<1x32x20xf32, #tpu.memory_space<vmem>>) attributes {dimension_semantics = [#tpu.dimension_semantics<parallel>], iteration_bounds = array<i64: 2>, scalar_prefetch = 0 : i64, scratch_operands = 1 : i64, tpu.core_type = #tpu.core_type<tc>, window_params = [{transform_indices = @transform_0, window_bounds = array<i64: 1, 32, 16>}, {pipeline_mode = #tpu.pipeline_mode<synchronous>, transform_indices = @transform_1, window_bounds = array<i64: 32, 1>}, {pipeline_mode = #tpu.pipeline_mode<synchronous>, transform_indices = @transform_2, window_bounds = array<i64: 32, 1>}, {pipeline_mode = #tpu.pipeline_mode<synchronous>, transform_indices = @transform_3, window_bounds = array<i64: 16, 96>}, {pipeline_mode = #tpu.pipeline_mode<synchronous>, transform_indices = @transform_4, window_bounds = array<i64: 16, 1>}, {pipeline_mode = #tpu.pipeline_mode<synchronous>, transform_indices = @transform_5, window_bounds = array<i64: 32, 16>}, {pipeline_mode = #tpu.pipeline_mode<synchronous>, transform_indices = @transform_6, window_bounds = array<i64: 32, 1>}, {transform_indices = @transform_7, window_bounds = array<i64: 1, 32, 16>}]} {
    %c0 = arith.constant 0 : index
    %c0_0 = arith.constant 0 : index
    %0 = vector.load %arg2[%c0, %c0_0] : memref<32x1xf32, #tpu.memory_space<vmem>>, vector<32x1xf32>
    %c0_1 = arith.constant 0 : index
    %c0_2 = arith.constant 0 : index
    %1 = vector.load %arg3[%c0_1, %c0_2] : memref<32x1xf32, #tpu.memory_space<vmem>>, vector<32x1xf32>
    %c0_3 = arith.constant 0 : index
    %c0_4 = arith.constant 0 : index
    %2 = vector.load %arg4[%c0_3, %c0_4] : memref<16x96xf32, #tpu.memory_space<vmem>>, vector<16x96xf32>
    %c0_5 = arith.constant 0 : index
    %c0_6 = arith.constant 0 : index
    %3 = vector.load %arg5[%c0_5, %c0_6] : memref<16x1xf32, #tpu.memory_space<vmem>>, vector<16x1xf32>
    %c0_7 = arith.constant 0 : index
    %c0_8 = arith.constant 0 : index
    %4 = vector.load %arg6[%c0_7, %c0_8] : memref<32x16xf32, #tpu.memory_space<vmem>>, vector<32x16xf32>
    %c0_9 = arith.constant 0 : index
    %c0_10 = arith.constant 0 : index
    %5 = vector.load %arg7[%c0_9, %c0_10] : memref<32x1xf32, #tpu.memory_space<vmem>>, vector<32x1xf32>
    %cst = arith.constant 0.000000e+00 : f32
    %6 = vector.broadcast %cst : f32 to vector<1x32x2xf32>
    %c0_11 = arith.constant 0 : index
    %c0_12 = arith.constant 0 : index
    %c0_13 = arith.constant 0 : index
    %7 = vector.load %arg9[%c0_11, %c0_12, %c0_13] : memref<1x32x20xf32, #tpu.memory_space<vmem>>, vector<1x32x2xf32>
    tpu.vector_store %arg9[%c0_11, %c0_12, %c0_13], %6 {strides = array<i32>} : memref<1x32x20xf32, #tpu.memory_space<vmem>>, vector<1x32x2xf32>,
    %cst_14 = arith.constant 0.000000e+00 : f32
    %8 = vector.broadcast %cst_14 : f32 to vector<1x32x2xf32>
    %c0_15 = arith.constant 0 : index
    %c0_16 = arith.constant 0 : index
    %c18 = arith.constant 18 : index
    %9 = vector.load %arg9[%c0_15, %c0_16, %c18] : memref<1x32x20xf32, #tpu.memory_space<vmem>>, vector<1x32x2xf32>
    tpu.vector_store %arg9[%c0_15, %c0_16, %c18], %8 {strides = array<i32>} : memref<1x32x20xf32, #tpu.memory_space<vmem>>, vector<1x32x2xf32>,
    %c0_17 = arith.constant 0 : index
    %c0_18 = arith.constant 0 : index
    %c0_19 = arith.constant 0 : index
    %10 = vector.load %arg1[%c0_17, %c0_18, %c0_19] : memref<1x32x16xf32, #tpu.memory_space<vmem>>, vector<1x32x16xf32>
    %11 = vector.shape_cast %10 : vector<1x32x16xf32> to vector<32x16xf32>
    %12 = vector.broadcast %0 : vector<32x1xf32> to vector<32x16xf32>
    %13 = arith.mulf %11, %12 : vector<32x16xf32>
    %14 = vector.broadcast %1 : vector<32x1xf32> to vector<32x16xf32>
    %15 = arith.addf %13, %14 : vector<32x16xf32>
    %cst_20 = arith.constant 0.000000e+00 : f32
    %16 = vector.broadcast %cst_20 : f32 to vector<32x16xf32>
    %17 = arith.maximumf %15, %16 : vector<32x16xf32>
    %c0_21 = arith.constant 0 : index
    %c0_22 = arith.constant 0 : index
    %c2 = arith.constant 2 : index
    %18 = vector.load %arg9[%c0_21, %c0_22, %c2] : memref<1x32x20xf32, #tpu.memory_space<vmem>>, vector<1x32x16xf32>
    %19 = vector.shape_cast %18 : vector<1x32x16xf32> to vector<32x16xf32>
    %20 = vector.shape_cast %17 : vector<32x16xf32> to vector<1x32x16xf32>
    tpu.vector_store %arg9[%c0_21, %c0_22, %c2], %20 {strides = array<i32>} : memref<1x32x20xf32, #tpu.memory_space<vmem>>, vector<1x32x16xf32>,
    %c0_23 = arith.constant 0 : index
    %c0_24 = arith.constant 0 : index
    %c0_25 = arith.constant 0 : index
    %21 = vector.load %arg9[%c0_23, %c0_24, %c0_25] : memref<1x32x20xf32, #tpu.memory_space<vmem>>, vector<1x32x20xf32>
    %22 = vector.shape_cast %21 : vector<1x32x20xf32> to vector<32x20xf32>
    %23 = vector.extract_strided_slice %22 {offsets = [0, 0], sizes = [32, 16], strides = [1, 1]} : vector<32x20xf32> to vector<32x16xf32>
    %24 = vector.extract_strided_slice %22 {offsets = [0, 2], sizes = [32, 16], strides = [1, 1]} : vector<32x20xf32> to vector<32x16xf32>
    %25 = vector.extract_strided_slice %22 {offsets = [0, 4], sizes = [32, 16], strides = [1, 1]} : vector<32x20xf32> to vector<32x16xf32>
    %26 = tpu.concatenate %23, %24, %25 in 0 : vector<32x16xf32>, vector<32x16xf32>, vector<32x16xf32> -> vector<96x16xf32>
    %cst_26 = arith.constant dense<0.000000e+00> : vector<16x16xf32>
    %27 = tpu.matmul %2, %26, %cst_26 {dimension_numbers = #tpu.dot_dimension_numbers<[1], [0], [0], [1], [0, 0, 1, 1], [], []>} : vector<16x96xf32>, vector<96x16xf32>, vector<16x16xf32> -> vector<16x16xf32>
    %28 = vector.broadcast %3 : vector<16x1xf32> to vector<16x16xf32>
    %29 = arith.addf %27, %28 : vector<16x16xf32>
    %cst_27 = arith.constant 0.000000e+00 : f32
    %30 = vector.broadcast %cst_27 : f32 to vector<16x16xf32>
    %31 = arith.maximumf %29, %30 : vector<16x16xf32>
    %cst_28 = arith.constant dense<0.000000e+00> : vector<32x16xf32>
    %32 = tpu.matmul %4, %31, %cst_28 {dimension_numbers = #tpu.dot_dimension_numbers<[1], [0], [0], [1], [0, 0, 1, 1], [], []>} : vector<32x16xf32>, vector<16x16xf32>, vector<32x16xf32> -> vector<32x16xf32>
    %33 = vector.broadcast %5 : vector<32x1xf32> to vector<32x16xf32>
    %34 = arith.addf %32, %33 : vector<32x16xf32>
    %35 = arith.addf %11, %34 : vector<32x16xf32>
    %c0_29 = arith.constant 0 : index
    %c0_30 = arith.constant 0 : index
    %c0_31 = arith.constant 0 : index
    %36 = vector.load %arg8[%c0_29, %c0_30, %c0_31] : memref<1x32x16xf32, #tpu.memory_space<vmem>>, vector<1x32x16xf32>
    %37 = vector.shape_cast %36 : vector<1x32x16xf32> to vector<32x16xf32>
    %38 = vector.shape_cast %35 : vector<32x16xf32> to vector<1x32x16xf32>
    tpu.vector_store %arg8[%c0_29, %c0_30, %c0_31], %38 {strides = array<i32>} : memref<1x32x16xf32, #tpu.memory_space<vmem>>, vector<1x32x16xf32>,
    return
  }
  func.func @transform_0(%arg0: i32) -> (i32, i32, i32) {
    %c0_i32 = arith.constant 0 : i32
    %c0_i32_0 = arith.constant 0 : i32
    %c0_i32_1 = arith.constant 0 : i32
    return %arg0, %c0_i32, %c0_i32_0 : i32, i32, i32
  }
  func.func @transform_1(%arg0: i32) -> (i32, i32) {
    %c0_i32 = arith.constant 0 : i32
    %c0_i32_0 = arith.constant 0 : i32
    %c0_i32_1 = arith.constant 0 : i32
    return %c0_i32, %c0_i32_0 : i32, i32
  }
  func.func @transform_2(%arg0: i32) -> (i32, i32) {
    %c0_i32 = arith.constant 0 : i32
    %c0_i32_0 = arith.constant 0 : i32
    %c0_i32_1 = arith.constant 0 : i32
    return %c0_i32, %c0_i32_0 : i32, i32
  }
  func.func @transform_3(%arg0: i32) -> (i32, i32) {
    %c0_i32 = arith.constant 0 : i32
    %c0_i32_0 = arith.constant 0 : i32
    %c0_i32_1 = arith.constant 0 : i32
    return %c0_i32, %c0_i32_0 : i32, i32
  }
  func.func @transform_4(%arg0: i32) -> (i32, i32) {
    %c0_i32 = arith.constant 0 : i32
    %c0_i32_0 = arith.constant 0 : i32
    %c0_i32_1 = arith.constant 0 : i32
    return %c0_i32, %c0_i32_0 : i32, i32
  }
  func.func @transform_5(%arg0: i32) -> (i32, i32) {
    %c0_i32 = arith.constant 0 : i32
    %c0_i32_0 = arith.constant 0 : i32
    %c0_i32_1 = arith.constant 0 : i32
    return %c0_i32, %c0_i32_0 : i32, i32
  }
  func.func @transform_6(%arg0: i32) -> (i32, i32) {
    %c0_i32 = arith.constant 0 : i32
    %c0_i32_0 = arith.constant 0 : i32
    %c0_i32_1 = arith.constant 0 : i32
    return %c0_i32, %c0_i32_0 : i32, i32
  }
  func.func @transform_7(%arg0: i32) -> (i32, i32, i32) {
    %c0_i32 = arith.constant 0 : i32
    %c0_i32_0 = arith.constant 0 : i32
    %c0_i32_1 = arith.constant 0 : i32
    return %arg0, %c0_i32, %c0_i32_0 : i32, i32, i32
  }
}

</mosaic_0001>

<llo_original>
// kernel: tpu_custom_call.1
$region0: #{tpu_custom_call.1}
  #allocation0 [shape = 'u32[]', space=smem, size = 0x4, offset = 0x4, fixed_abs, tag = 'smem constant byte address 0x4 - core index']
  #allocation1 [shape = 'u32[144,128]{1,0:T(1,128)}', space=vmem, size = 0x12000, scoped, tag = 'internal scratch']
  #allocation2 [shape = 'f32[1,32,20]{2,1,0:T(8,128)}', space=vmem, size = 0x4000, scoped, tag = 'scratch operand']
  %s0 = inlined_call_operand.vmem [shape: f32[2,32,16], index: 0, kind: input, shape index: {}]
  %s1 = inlined_call_operand.vmem [shape: f32[32,1], index: 1, kind: input, shape index: {}]
  %s2 = inlined_call_operand.vmem [shape: f32[32,1], index: 2, kind: input, shape index: {}]
  %s3 = inlined_call_operand.vmem [shape: f32[16,96], index: 3, kind: input, shape index: {}]
  %s4 = inlined_call_operand.vmem [shape: f32[16,1], index: 4, kind: input, shape index: {}]
  %s5 = inlined_call_operand.vmem [shape: f32[32,16], index: 5, kind: input, shape index: {}]
  %s6 = inlined_call_operand.vmem [shape: f32[32,1], index: 6, kind: input, shape index: {}]
  %s7 = inlined_call_operand.vmem [shape: f32[2,32,16], index: 7, kind: output, shape index: {}]
  %s8 = sld [smem:[#allocation0]]
  $region61: #{tpu_custom_call.1} parent=0
    _
  %s10 = ssub.s32 1, %s8
  %s11 = scalar_select 0, %s10, %s8
  loop: start=0, step=1, limit=4
  $region2: #{tpu_custom_call.1} parent=0 // loop_pre_header
    _
  $region3: #{tpu_custom_call.1} parent=0 // loop_header
    %s13 = sphi 0, %s17
    %p14 = scmp.ge.s32.totalorder %s13, 4
    %s23 = sphi 0, %s25
    %s26 = sphi 0, %s23
    %s27 = sphi 0, %s26
    %s43 = sphi 0, %s27
    %s47 = sphi 0, %s47
    %s49 = sphi 0, %s47
    %s50 = sphi 0, %s49
    %s64 = sphi 0, %s50
    %s68 = sphi 0, %s68
    %s70 = sphi 0, %s68
    %s71 = sphi 0, %s70
    %s85 = sphi 0, %s71
    %s89 = sphi 0, %s89
    %s91 = sphi 0, %s89
    %s92 = sphi 0, %s91
    %s106 = sphi 0, %s92
    %s110 = sphi 0, %s110
    %s112 = sphi 0, %s110
    %s113 = sphi 0, %s112
    %s127 = sphi 0, %s113
    %s131 = sphi 0, %s131
    %s133 = sphi 0, %s131
    %s134 = sphi 0, %s133
    %s148 = sphi 0, %s134
    %s152 = sphi 0, %s152
    %s154 = sphi 0, %s152
    %s155 = sphi 0, %s154
    %s169 = sphi 0, %s155
    %s175 = sphi 0, %s177
    %s178 = sphi 0, %s175
    %s179 = sphi 0, %s178
    %s195 = sphi 0, %s179
  $region4: #{tpu_custom_call.1} parent=0 // loop_header_branch
    %16 = sbr.rel (%p14) target = $region8
  $region5: #{tpu_custom_call.1} parent=0 // loop_body
    %s18 = ssub.s32 %s13, 1
    %s19 = ssub.s32 %s13, 2
    %s20 = sadd.s32 %s13, 1
    %s21 = ssub.s32 %s13, %s20
    %p22 = scmp.eq.s32.totalorder %s21, 0
    %s24 = sadd.s32 %s23, 1
    %s25 = scalar_select %p22, %s23, %s24
    %p28 = pneg %p22
    %p29 = scmp.eq.s32.totalorder %s13, 1
    %p30 = por %p28, %p29
    %p31 = scmp.ne.s32.totalorder %s23, %s26
    %p32 = scmp.eq.s32.totalorder %s13, 0
    %p33 = por %p31, %p32
    %p34 = scmp.ne.s32.totalorder %s23, %s26
    %p35 = scmp.eq.s32.totalorder %s18, 1
    %p36 = por %p34, %p35
    %p37 = scmp.ne.s32.totalorder %s26, %s27
    %p38 = scmp.eq.s32.totalorder %s18, 0
    %p39 = por %p37, %p38
    %p40 = scmp.ne.s32.totalorder %s26, %s27
    %p41 = scmp.eq.s32.totalorder %s19, 1
    %p42 = por %p40, %p41
    %p44 = scmp.ne.s32.totalorder %s27, %s43
    %p45 = scmp.eq.s32.totalorder %s19, 0
    %p46 = por %p44, %p45
    %s48 = sadd.s32 %s47, 1
    %p51 = scmp.eq.s32.totalorder %s13, 1
    %p52 = scmp.ne.s32.totalorder %s47, %s49
    %p53 = scmp.eq.s32.totalorder %s13, 0
    %p54 = por %p52, %p53
    %p55 = scmp.ne.s32.totalorder %s47, %s49
    %p56 = scmp.eq.s32.totalorder %s18, 1
    %p57 = por %p55, %p56
    %p58 = scmp.ne.s32.totalorder %s49, %s50
    %p59 = scmp.eq.s32.totalorder %s18, 0
    %p60 = por %p58, %p59
    %p61 = scmp.ne.s32.totalorder %s49, %s50
    %p62 = scmp.eq.s32.totalorder %s19, 1
    %p63 = por %p61, %p62
    %p65 = scmp.ne.s32.totalorder %s50, %s64
    %p66 = scmp.eq.s32.totalorder %s19, 0
    %p67 = por %p65, %p66
    %s69 = sadd.s32 %s68, 1
    %p72 = scmp.eq.s32.totalorder %s13, 1
    %p73 = scmp.ne.s32.totalorder %s68, %s70
    %p74 = scmp.eq.s32.totalorder %s13, 0
    %p75 = por %p73, %p74
    %p76 = scmp.ne.s32.totalorder %s68, %s70
    %p77 = scmp.eq.s32.totalorder %s18, 1
    %p78 = por %p76, %p77
    %p79 = scmp.ne.s32.totalorder %s70, %s71
    %p80 = scmp.eq.s32.totalorder %s18, 0
    %p81 = por %p79, %p80
    %p82 = scmp.ne.s32.totalorder %s70, %s71
    %p83 = scmp.eq.s32.totalorder %s19, 1
    %p84 = por %p82, %p83
    %p86 = scmp.ne.s32.totalorder %s71, %s85
    %p87 = scmp.eq.s32.totalorder %s19, 0
    %p88 = por %p86, %p87
    %s90 = sadd.s32 %s89, 1
    %p93 = scmp.eq.s32.totalorder %s13, 1
    %p94 = scmp.ne.s32.totalorder %s89, %s91
    %p95 = scmp.eq.s32.totalorder %s13, 0
    %p96 = por %p94, %p95
    %p97 = scmp.ne.s32.totalorder %s89, %s91
    %p98 = scmp.eq.s32.totalorder %s18, 1
    %p99 = por %p97, %p98
    %p100 = scmp.ne.s32.totalorder %s91, %s92
    %p101 = scmp.eq.s32.totalorder %s18, 0
    %p102 = por %p100, %p101
    %p103 = scmp.ne.s32.totalorder %s91, %s92
    %p104 = scmp.eq.s32.totalorder %s19, 1
    %p105 = por %p103, %p104
    %p107 = scmp.ne.s32.totalorder %s92, %s106
    %p108 = scmp.eq.s32.totalorder %s19, 0
    %p109 = por %p107, %p108
    %s111 = sadd.s32 %s110, 1
    %p114 = scmp.eq.s32.totalorder %s13, 1
    %p115 = scmp.ne.s32.totalorder %s110, %s112
    %p116 = scmp.eq.s32.totalorder %s13, 0
    %p117 = por %p115, %p116
    %p118 = scmp.ne.s32.totalorder %s110, %s112
    %p119 = scmp.eq.s32.totalorder %s18, 1
    %p120 = por %p118, %p119
    %p121 = scmp.ne.s32.totalorder %s112, %s113
    %p122 = scmp.eq.s32.totalorder %s18, 0
    %p123 = por %p121, %p122
    %p124 = scmp.ne.s32.totalorder %s112, %s113
    %p125 = scmp.eq.s32.totalorder %s19, 1
    %p126 = por %p124, %p125
    %p128 = scmp.ne.s32.totalorder %s113, %s127
    %p129 = scmp.eq.s32.totalorder %s19, 0
    %p130 = por %p128, %p129
    %s132 = sadd.s32 %s131, 1
    %p135 = scmp.eq.s32.totalorder %s13, 1
    %p136 = scmp.ne.s32.totalorder %s131, %s133
    %p137 = scmp.eq.s32.totalorder %s13, 0
    %p138 = por %p136, %p137
    %p139 = scmp.ne.s32.totalorder %s131, %s133
    %p140 = scmp.eq.s32.totalorder %s18, 1
    %p141 = por %p139, %p140
    %p142 = scmp.ne.s32.totalorder %s133, %s134
    %p143 = scmp.eq.s32.totalorder %s18, 0
    %p144 = por %p142, %p143
    %p145 = scmp.ne.s32.totalorder %s133, %s134
    %p146 = scmp.eq.s32.totalorder %s19, 1
    %p147 = por %p145, %p146
    %p149 = scmp.ne.s32.totalorder %s134, %s148
    %p150 = scmp.eq.s32.totalorder %s19, 0
    %p151 = por %p149, %p150
    %s153 = sadd.s32 %s152, 1
    %p156 = scmp.eq.s32.totalorder %s13, 1
    %p157 = scmp.ne.s32.totalorder %s152, %s154
    %p158 = scmp.eq.s32.totalorder %s13, 0
    %p159 = por %p157, %p158
    %p160 = scmp.ne.s32.totalorder %s152, %s154
    %p161 = scmp.eq.s32.totalorder %s18, 1
    %p162 = por %p160, %p161
    %p163 = scmp.ne.s32.totalorder %s154, %s155
    %p164 = scmp.eq.s32.totalorder %s18, 0
    %p165 = por %p163, %p164
    %p166 = scmp.ne.s32.totalorder %s154, %s155
    %p167 = scmp.eq.s32.totalorder %s19, 1
    %p168 = por %p166, %p167
    %p170 = scmp.ne.s32.totalorder %s155, %s169
    %p171 = scmp.eq.s32.totalorder %s19, 0
    %p172 = por %p170, %p171
    %s173 = ssub.s32 %s13, %s20
    %p174 = scmp.eq.s32.totalorder %s173, 0
    %s176 = sadd.s32 %s175, 1
    %s177 = scalar_select %p174, %s175, %s176
    %p180 = pneg %p174
    %p181 = scmp.eq.s32.totalorder %s13, 1
    %p182 = por %p180, %p181
    %p183 = scmp.ne.s32.totalorder %s175, %s178
    %p184 = scmp.eq.s32.totalorder %s13, 0
    %p185 = por %p183, %p184
    %p186 = scmp.ne.s32.totalorder %s175, %s178
    %p187 = scmp.eq.s32.totalorder %s18, 1
    %p188 = por %p186, %p187
    %p189 = scmp.ne.s32.totalorder %s178, %s179
    %p190 = scmp.eq.s32.totalorder %s18, 0
    %p191 = por %p189, %p190
    %p192 = scmp.ne.s32.totalorder %s178, %s179
    %p193 = scmp.eq.s32.totalorder %s19, 1
    %p194 = por %p192, %p193
    %p196 = scmp.ne.s32.totalorder %s179, %s195
    %p197 = scmp.eq.s32.totalorder %s19, 0
    %p198 = por %p196, %p197
    %p199 = scmp.le.s32.totalorder 1, %s13
    %p200 = scmp.lt.s32.totalorder %s13, 3
    %p201 = pnand %p199, %p200
    %p202 = pneg %p201
    // Predicated region
    $region9: #{tpu_custom_call.1} parent=5 // pred_check
      _
    $region10: #{tpu_custom_call.1} parent=5 // pred_check_branch
      %204 = sbr.rel (%p201) target = $region12
    $region11: #{tpu_custom_call.1} parent=5 // pred_region
      %s205 = ssub.s32 %s13, 1
      // Predicated region
      $region13: #{tpu_custom_call.1} parent=11 // pred_check
        %p206 = pneg %p60
      $region14: #{tpu_custom_call.1} parent=11 // pred_check_branch
        %208 = sbr.rel (%p206) target = $region16
      $region15: #{tpu_custom_call.1} parent=11 // pred_region
        _
      $region16: #{tpu_custom_call.1} parent=11 // pred_fallthru
        _
      // Predicated region
      $region17: #{tpu_custom_call.1} parent=11 // pred_check
        %p209 = pneg %p81
      $region18: #{tpu_custom_call.1} parent=11 // pred_check_branch
        %211 = sbr.rel (%p209) target = $region20
      $region19: #{tpu_custom_call.1} parent=11 // pred_region
        _
      $region20: #{tpu_custom_call.1} parent=11 // pred_fallthru
        _
      // Predicated region
      $region21: #{tpu_custom_call.1} parent=11 // pred_check
        %p212 = pneg %p102
      $region22: #{tpu_custom_call.1} parent=11 // pred_check_branch
        %214 = sbr.rel (%p212) target = $region24
      $region23: #{tpu_custom_call.1} parent=11 // pred_region
        _
      $region24: #{tpu_custom_call.1} parent=11 // pred_fallthru
        _
      // Predicated region
      $region25: #{tpu_custom_call.1} parent=11 // pred_check
        %p215 = pneg %p123
      $region26: #{tpu_custom_call.1} parent=11 // pred_check_branch
        %217 = sbr.rel (%p215) target = $region28
      $region27: #{tpu_custom_call.1} parent=11 // pred_region
        _
      $region28: #{tpu_custom_call.1} parent=11 // pred_fallthru
        _
      // Predicated region
      $region29: #{tpu_custom_call.1} parent=11 // pred_check
        %p218 = pneg %p144
      $region30: #{tpu_custom_call.1} parent=11 // pred_check_branch
        %220 = sbr.rel (%p218) target = $region32
      $region31: #{tpu_custom_call.1} parent=11 // pred_region
        _
      $region32: #{tpu_custom_call.1} parent=11 // pred_fallthru
        _
      // Predicated region
      $region33: #{tpu_custom_call.1} parent=11 // pred_check
        %p221 = pneg %p165
      $region34: #{tpu_custom_call.1} parent=11 // pred_check_branch
        %223 = sbr.rel (%p221) target = $region36
      $region35: #{tpu_custom_call.1} parent=11 // pred_region
        _
      $region36: #{tpu_custom_call.1} parent=11 // pred_fallthru
        _
    $region12: #{tpu_custom_call.1} parent=5 // pred_fallthru
      _
    %p224 = scmp.lt.s32.totalorder %s13, 2
    // Predicated region
    $region37: #{tpu_custom_call.1} parent=5 // pred_check
      %p225 = pneg %p224
    $region38: #{tpu_custom_call.1} parent=5 // pred_check_branch
      %227 = sbr.rel (%p225) target = $region40
    $region39: #{tpu_custom_call.1} parent=5 // pred_region
      // Predicated region
      $region41: #{tpu_custom_call.1} parent=39 // pred_check
        %p228 = pneg %p33
      $region42: #{tpu_custom_call.1} parent=39 // pred_check_branch
        %230 = sbr.rel (%p228) target = $region44
      $region43: #{tpu_custom_call.1} parent=39 // pred_region
        %p231 = scmp.lt.s32.totalorder %s13, 1
        %s232 = scalar_select %p231, %s13, 1
        %s233 = smul.addr %s232, 4
        %s234 = smul.addr %s233, 8
        %s235 = scalar_lea.vmem %s0, %s234
      $region44: #{tpu_custom_call.1} parent=39 // pred_fallthru
        _
    $region40: #{tpu_custom_call.1} parent=5 // pred_fallthru
      _
    %p236 = scmp.le.s32.totalorder 1, %s13
    %p237 = scmp.lt.s32.totalorder %s13, 3
    %p238 = pnand %p236, %p237
    %p239 = pneg %p238
    // Predicated region
    $region45: #{tpu_custom_call.1} parent=5 // pred_check
      _
    $region46: #{tpu_custom_call.1} parent=5 // pred_check_branch
      %241 = sbr.rel (%p238) target = $region48
    $region47: #{tpu_custom_call.1} parent=5 // pred_region
      %s242 = ssub.s32 %s13, 1
      %p243 = scmp.lt.s32.totalorder %s18, 1
      %s244 = scalar_select %p243, %s18, 1
      %s245 = smul.addr %s244, 4
      %s246 = smul.addr %s245, 8
      %s247 = scalar_lea.vmem %s0, %s246
      %p248 = pneg %p39
      %p249 = pneg %p36
      %p250 = pneg %p60
      %p251 = pneg %p57
      %p252 = pneg %p81
      %p253 = pneg %p78
      %p254 = pneg %p102
      %p255 = pneg %p99
      %p256 = pneg %p123
      %p257 = pneg %p120
      %p258 = pneg %p144
      %p259 = pneg %p141
      %p260 = pneg %p165
      %p261 = pneg %p162
      %p262 = pneg %p191
      %p263 = pneg %p188
      %p264 = scmp.lt.s32.totalorder %s18, 1
      %s265 = scalar_select %p264, %s18, 1
      %s266 = smul.addr %s265, 4
      %s267 = smul.addr %s266, 8
      %s268 = scalar_lea.vmem %s7, %s267
      %p269 = scmp.lt.s32.totalorder %s18, 1
      %s270 = scalar_select %p269, %s18, 1
      %s271 = smul.addr %s270, 4
      %s272 = smul.addr %s271, 8
      %s273 = scalar_lea.vmem %s0, %s272
      %p274 = scmp.lt.s32.totalorder %s18, 1
      %s275 = scalar_select %p274, %s18, 1
      %s276 = smul.addr %s275, 4
      %s277 = smul.addr %s276, 8
      %s278 = scalar_lea.vmem %s7, %s277
      %v279 = vld [vmem:[%s1] sm:$0xff]
      %v280 = vld [vmem:[%s1 + $0x8] sm:$0xff]
      %v281 = vld [vmem:[%s1 + $0x10] sm:$0xff]
      %v282 = vld [vmem:[%s1 + $0x18] sm:$0xff]
      %v283 = vld [vmem:[%s2] sm:$0xff]
      %v284 = vld [vmem:[%s2 + $0x8] sm:$0xff]
      %v285 = vld [vmem:[%s2 + $0x10] sm:$0xff]
      %v286 = vld [vmem:[%s2 + $0x18] sm:$0xff]
      %v287 = vld [vmem:[%s3] sm:$0xff]
      %v288 = vld [vmem:[%s3 + $0x8] sm:$0xff]
      %v289 = vld [vmem:[%s4] sm:$0xff]
      %v290 = vld [vmem:[%s4 + $0x8] sm:$0xff]
      %v291 = vld [vmem:[%s5] sm:$0xff]
      %v292 = vld [vmem:[%s5 + $0x8] sm:$0xff]
      %v293 = vld [vmem:[%s5 + $0x10] sm:$0xff]
      %v294 = vld [vmem:[%s5 + $0x18] sm:$0xff]
      %v295 = vld [vmem:[%s6] sm:$0xff]
      %v296 = vld [vmem:[%s6 + $0x8] sm:$0xff]
      %v297 = vld [vmem:[%s6 + $0x10] sm:$0xff]
      %v298 = vld [vmem:[%s6 + $0x18] sm:$0xff]
      %vm299 = vcmask 15360
      %300 = vst.msk [vmem:[#allocation2] sm:$0xff] %vm299, 0.0
      %301 = vst.msk [vmem:[#allocation2 + $0x8] sm:$0xff] %vm299, 0.0
      %302 = vst.msk [vmem:[#allocation2 + $0x10] sm:$0xff] %vm299, 0.0
      %303 = vst.msk [vmem:[#allocation2 + $0x18] sm:$0xff] %vm299, 0.0
      %vm304 = vcmask 162960
      %305 = vst.msk [vmem:[#allocation2] sm:$0xff] %vm304, 0.0
      %306 = vst.msk [vmem:[#allocation2 + $0x8] sm:$0xff] %vm304, 0.0
      %307 = vst.msk [vmem:[#allocation2 + $0x10] sm:$0xff] %vm304, 0.0
      %308 = vst.msk [vmem:[#allocation2 + $0x18] sm:$0xff] %vm304, 0.0
      %v309 = vld [vmem:[%s273] sm:$0xff]
      %v310 = vld [vmem:[%s273 + $0x8] sm:$0xff]
      %v311 = vld [vmem:[%s273 + $0x10] sm:$0xff]
      %v312 = vld [vmem:[%s273 + $0x18] sm:$0xff]
      %314 = vset.pattern.permute.xlu0 0
      %315 = vperm.xlu0 %314, %v279
      %v316 = vpop.permute.xlu0 %315
      %319 = vset.pattern.permute.xlu0 0
      %320 = vperm.xlu0 %319, %v280
      %v321 = vpop.permute.xlu0 %320
      %324 = vset.pattern.permute.xlu0 0
      %325 = vperm.xlu0 %324, %v281
      %v326 = vpop.permute.xlu0 %325
      %329 = vset.pattern.permute.xlu0 0
      %330 = vperm.xlu0 %329, %v282
      %v331 = vpop.permute.xlu0 %330
      %v333 = vmul.f32 %v309, %v316
      %v334 = vmul.f32 %v310, %v321
      %v335 = vmul.f32 %v311, %v326
      %v336 = vmul.f32 %v312, %v331
      %338 = vset.pattern.permute.xlu0 0
      %339 = vperm.xlu0 %338, %v283
      %v340 = vpop.permute.xlu0 %339
      %343 = vset.pattern.permute.xlu0 0
      %344 = vperm.xlu0 %343, %v284
      %v345 = vpop.permute.xlu0 %344
      %348 = vset.pattern.permute.xlu0 0
      %349 = vperm.xlu0 %348, %v285
      %v350 = vpop.permute.xlu0 %349
      %353 = vset.pattern.permute.xlu0 0
      %354 = vperm.xlu0 %353, %v286
      %v355 = vpop.permute.xlu0 %354
      %v357 = vadd.f32 %v333, %v340
      %v358 = vadd.f32 %v334, %v345
      %v359 = vadd.f32 %v335, %v350
      %v360 = vadd.f32 %v336, %v355
      %v361 = vmax.f32 %v357, 0.0
      %v362 = vmax.f32 %v358, 0.0
      %v363 = vmax.f32 %v359, 0.0
      %v364 = vmax.f32 %v360, 0.0
      %369 = vrot.lane.b32.xlu0 %v361, 2
      %v370 = vpop.permute.xlu0 %369
      %371 = vrot.lane.b32.xlu0 %v362, 2
      %v372 = vpop.permute.xlu0 %371
      %373 = vrot.lane.b32.xlu0 %v363, 2
      %v374 = vpop.permute.xlu0 %373
      %375 = vrot.lane.b32.xlu0 %v364, 2
      %v376 = vpop.permute.xlu0 %375
      %vm381 = vcmask 146448
      %382 = vst.msk [vmem:[#allocation2] sm:$0xff] %vm381, %v370
      %383 = vst.msk [vmem:[#allocation2 + $0x8] sm:$0xff] %vm381, %v372
      %384 = vst.msk [vmem:[#allocation2 + $0x10] sm:$0xff] %vm381, %v374
      %385 = vst.msk [vmem:[#allocation2 + $0x18] sm:$0xff] %vm381, %v376
      %v386 = vld [vmem:[#allocation2] sm:$0xff]
      %v387 = vld [vmem:[#allocation2 + $0x8] sm:$0xff]
      %v388 = vld [vmem:[#allocation2 + $0x10] sm:$0xff]
      %v389 = vld [vmem:[#allocation2 + $0x18] sm:$0xff]
      %394 = vrot.lane.b32.xlu0 %v386, 126
      %v395 = vpop.permute.xlu0 %394
      %396 = vrot.lane.b32.xlu0 %v387, 126
      %v397 = vpop.permute.xlu0 %396
      %398 = vrot.lane.b32.xlu0 %v388, 126
      %v399 = vpop.permute.xlu0 %398
      %400 = vrot.lane.b32.xlu0 %v389, 126
      %v401 = vpop.permute.xlu0 %400
      %406 = vrot.lane.b32.xlu0 %v386, 124
      %v407 = vpop.permute.xlu0 %406
      %408 = vrot.lane.b32.xlu0 %v387, 124
      %v409 = vpop.permute.xlu0 %408
      %410 = vrot.lane.b32.xlu0 %v388, 124
      %v411 = vpop.permute.xlu0 %410
      %412 = vrot.lane.b32.xlu0 %v389, 124
      %v413 = vpop.permute.xlu0 %412
      %419 = vset.pattern.permute.xlu0 0
      %420 = vperm.xlu0 %419, %v289
      %v421 = vpop.permute.xlu0 %420
      %424 = vset.pattern.permute.xlu0 0
      %425 = vperm.xlu0 %424, %v290
      %v426 = vpop.permute.xlu0 %425
      %vm428 = vcmask 785408
      %v430 = vsel %vm428, %v287, 0
      %v433 = vsel %vm428, %v288, 0
      %435 = vmatprep.subr.mxu0 0.0
      %436 = vmatpush1.msra.mxu0 %v386
      %437 = vmatprep.subr.mxu0 0.0
      %438 = vmatpush1.msra.mxu0 %v387
      %439 = vmatprep.subr.mxu0 0.0
      %440 = vmatpush1.msra.mxu0 %v388
      %441 = vmatprep.subr.mxu0 0.0
      %442 = vmatpush1.msra.mxu0 %v389
      %443 = vmatprep.subr.mxu0 0.0
      %444 = vmatpush1.msra.mxu0 %v395
      %445 = vmatprep.subr.mxu0 0.0
      %446 = vmatpush1.msra.mxu0 %v397
      %447 = vmatprep.subr.mxu0 0.0
      %448 = vmatpush1.msra.mxu0 %v399
      %449 = vmatprep.subr.mxu0 0.0
      %450 = vmatpush1.msra.mxu0 %v401
      %451 = vmatprep.subr.mxu0 0.0
      %452 = vmatpush1.msra.mxu0 %v407
      %453 = vmatprep.subr.mxu0 0.0
      %454 = vmatpush1.msra.mxu0 %v409
      %455 = vmatprep.subr.mxu0 0.0
      %456 = vmatpush1.msra.mxu0 %v411
      %457 = vmatprep.subr.mxu0 0.0
      %458 = vmatpush1.msra.mxu0 %v413
      %459 = vmatprep.subr.mxu0 0.0
      %460 = vmatpush1.msra.mxu0 0.0
      %461 = vmatprep.subr.mxu0 0.0
      %462 = vmatpush1.msra.mxu0 0.0
      %463 = vmatprep.subr.mxu0 0.0
      %464 = vmatpush1.msra.mxu0 0.0
      %465 = vmatprep.subr.mxu0 0.0
      %466 = vmatpush1.msra.mxu0 0.0
      %467 = vmatprep.subr.mxu0 0.0
      %468 = vmatpush1.msra.mxu0 0.0
      %469 = vmatprep.subr.mxu0 0.0
      %470 = vmatpush1.msra.mxu0 0.0
      %471 = vmatprep.subr.mxu0 0.0
      %472 = vmatpush1.msra.mxu0 0.0
      %473 = vmatprep.subr.mxu0 0.0
      %474 = vmatpush1.msra.mxu0 0.0
      %475 = vmatprep.subr.mxu0 0.0
      %476 = vmatpush1.msra.mxu0 0.0
      %477 = vmatprep.subr.mxu0 0.0
      %478 = vmatpush1.msra.mxu0 0.0
      %479 = vmatprep.subr.mxu0 0.0
      %480 = vmatpush1.msra.mxu0 0.0
      %481 = vmatprep.subr.mxu0 0.0
      %482 = vmatpush1.msra.mxu0 0.0
      %483 = vmatprep.subr.mxu0 0.0
      %484 = vmatpush1.msra.mxu0 0.0
      %485 = vmatprep.subr.mxu0 0.0
      %486 = vmatpush1.msra.mxu0 0.0
      %487 = vmatprep.subr.mxu0 0.0
      %488 = vmatpush1.msra.mxu0 0.0
      %489 = vmatprep.subr.mxu0 0.0
      %490 = vmatpush1.msra.mxu0 0.0
      %491 = vmatprep.subr.mxu0 0.0
      %492 = vmatpush1.msra.mxu0 0.0
      %493 = vmatprep.subr.mxu0 0.0
      %494 = vmatpush1.msra.mxu0 0.0
      %495 = vmatprep.subr.mxu0 0.0
      %496 = vmatpush1.msra.mxu0 0.0
      %497 = vmatprep.subr.mxu0 0.0
      %498 = vmatpush1.msra.mxu0 0.0
      %499 = vmatprep.mubr.f32.mxu0 0.0
      %500 = vmatmul.mubr.f32.gmra.mrb[0].mxu0 %v430
      %v501 = vpop.f32.mrb[0].mxu0
      %v502 = vadd.f32 %v421, %v501
      %v503 = vpop.f32.mrb[0].mxu0
      %504 = vmatprep.mubr.f32.mxu0 0.0
      %505 = vmatmul.mubr.f32.gmra.mrb[0].mxu0 %v433
      %v506 = vpop.f32.mrb[0].mxu0
      %v507 = vadd.f32 %v426, %v506
      %v508 = vpop.f32.mrb[0].mxu0
      %509 = vdwg.mxu0
      %v510 = vmax.f32 %v502, 0.0
      %v511 = vmax.f32 %v507, 0.0
      %513 = vset.pattern.permute.xlu0 0
      %514 = vperm.xlu0 %513, %v295
      %v515 = vpop.permute.xlu0 %514
      %518 = vset.pattern.permute.xlu0 0
      %519 = vperm.xlu0 %518, %v296
      %v520 = vpop.permute.xlu0 %519
      %523 = vset.pattern.permute.xlu0 0
      %524 = vperm.xlu0 %523, %v297
      %v525 = vpop.permute.xlu0 %524
      %528 = vset.pattern.permute.xlu0 0
      %529 = vperm.xlu0 %528, %v298
      %v530 = vpop.permute.xlu0 %529
      %vm532 = vcmask 130048
      %v534 = vsel %vm532, %v291, 0
      %v537 = vsel %vm532, %v292, 0
      %v540 = vsel %vm532, %v293, 0
      %v543 = vsel %vm532, %v294, 0
      %545 = vmatprep.subr.mxu0 0.0
      %546 = vmatpush1.msra.mxu0 %v510
      %547 = vmatprep.subr.mxu0 0.0
      %548 = vmatpush1.msra.mxu0 %v511
      %549 = vmatprep.subr.mxu0 0.0
      %550 = vmatpush1.msra.mxu0 0.0
      %551 = vmatprep.subr.mxu0 0.0
      %552 = vmatpush1.msra.mxu0 0.0
      %553 = vmatprep.subr.mxu0 0.0
      %554 = vmatpush1.msra.mxu0 0.0
      %555 = vmatprep.subr.mxu0 0.0
      %556 = vmatpush1.msra.mxu0 0.0
      %557 = vmatprep.subr.mxu0 0.0
      %558 = vmatpush1.msra.mxu0 0.0
      %559 = vmatprep.subr.mxu0 0.0
      %560 = vmatpush1.msra.mxu0 0.0
      %561 = vmatprep.subr.mxu0 0.0
      %562 = vmatpush1.msra.mxu0 0.0
      %563 = vmatprep.subr.mxu0 0.0
      %564 = vmatpush1.msra.mxu0 0.0
      %565 = vmatprep.subr.mxu0 0.0
      %566 = vmatpush1.msra.mxu0 0.0
      %567 = vmatprep.subr.mxu0 0.0
      %568 = vmatpush1.msra.mxu0 0.0
      %569 = vmatprep.subr.mxu0 0.0
      %570 = vmatpush1.msra.mxu0 0.0
      %571 = vmatprep.subr.mxu0 0.0
      %572 = vmatpush1.msra.mxu0 0.0
      %573 = vmatprep.subr.mxu0 0.0
      %574 = vmatpush1.msra.mxu0 0.0
      %575 = vmatprep.subr.mxu0 0.0
      %576 = vmatpush1.msra.mxu0 0.0
      %577 = vmatprep.subr.mxu0 0.0
      %578 = vmatpush1.msra.mxu0 0.0
      %579 = vmatprep.subr.mxu0 0.0
      %580 = vmatpush1.msra.mxu0 0.0
      %581 = vmatprep.subr.mxu0 0.0
      %582 = vmatpush1.msra.mxu0 0.0
      %583 = vmatprep.subr.mxu0 0.0
      %584 = vmatpush1.msra.mxu0 0.0
      %585 = vmatprep.subr.mxu0 0.0
      %586 = vmatpush1.msra.mxu0 0.0
      %587 = vmatprep.subr.mxu0 0.0
      %588 = vmatpush1.msra.mxu0 0.0
      %589 = vmatprep.subr.mxu0 0.0
      %590 = vmatpush1.msra.mxu0 0.0
      %591 = vmatprep.subr.mxu0 0.0
      %592 = vmatpush1.msra.mxu0 0.0
      %593 = vmatprep.subr.mxu0 0.0
      %594 = vmatpush1.msra.mxu0 0.0
      %595 = vmatprep.subr.mxu0 0.0
      %596 = vmatpush1.msra.mxu0 0.0
      %597 = vmatprep.subr.mxu0 0.0
      %598 = vmatpush1.msra.mxu0 0.0
      %599 = vmatprep.subr.mxu0 0.0
      %600 = vmatpush1.msra.mxu0 0.0
      %601 = vmatprep.subr.mxu0 0.0
      %602 = vmatpush1.msra.mxu0 0.0
      %603 = vmatprep.subr.mxu0 0.0
      %604 = vmatpush1.msra.mxu0 0.0
      %605 = vmatprep.subr.mxu0 0.0
      %606 = vmatpush1.msra.mxu0 0.0
      %607 = vmatprep.subr.mxu0 0.0
      %608 = vmatpush1.msra.mxu0 0.0
      %609 = vmatprep.mubr.f32.mxu0 0.0
      %610 = vmatmul.mubr.f32.gmra.mrb[0].mxu0 %v534
      %v611 = vpop.f32.mrb[0].mxu0
      %v612 = vadd.f32 %v515, %v611
      %v613 = vpop.f32.mrb[0].mxu0
      %614 = vmatprep.mubr.f32.mxu0 0.0
      %615 = vmatmul.mubr.f32.gmra.mrb[0].mxu0 %v537
      %v616 = vpop.f32.mrb[0].mxu0
      %v617 = vadd.f32 %v520, %v616
      %v618 = vpop.f32.mrb[0].mxu0
      %619 = vmatprep.mubr.f32.mxu0 0.0
      %620 = vmatmul.mubr.f32.gmra.mrb[0].mxu0 %v540
      %v621 = vpop.f32.mrb[0].mxu0
      %v622 = vadd.f32 %v525, %v621
      %v623 = vpop.f32.mrb[0].mxu0
      %624 = vmatprep.mubr.f32.mxu0 0.0
      %625 = vmatmul.mubr.f32.gmra.mrb[0].mxu0 %v543
      %v626 = vpop.f32.mrb[0].mxu0
      %v627 = vadd.f32 %v530, %v626
      %v628 = vpop.f32.mrb[0].mxu0
      %629 = vdwg.mxu0
      %v630 = vadd.f32 %v309, %v612
      %v631 = vadd.f32 %v310, %v617
      %v632 = vadd.f32 %v311, %v622
      %v633 = vadd.f32 %v312, %v627
      %634 = vst.msk [vmem:[%s278] sm:$0xff] %vm532, %v630
      %635 = vst.msk [vmem:[%s278 + $0x8] sm:$0xff] %vm532, %v631
      %636 = vst.msk [vmem:[%s278 + $0x10] sm:$0xff] %vm532, %v632
      %637 = vst.msk [vmem:[%s278 + $0x18] sm:$0xff] %vm532, %v633
      %p638 = scmp.lt.s32.totalorder %s18, 1
      %s639 = scalar_select %p638, %s18, 1
      %s640 = smul.addr %s639, 4
      %s641 = smul.addr %s640, 8
      %s642 = scalar_lea.vmem %s7, %s641
      // Predicated region
      $region49: #{tpu_custom_call.1} parent=47 // pred_check
        %p643 = pneg %p188
      $region50: #{tpu_custom_call.1} parent=47 // pred_check_branch
        %645 = sbr.rel (%p643) target = $region52
      $region51: #{tpu_custom_call.1} parent=47 // pred_region
        _
      $region52: #{tpu_custom_call.1} parent=47 // pred_fallthru
        _
    $region48: #{tpu_custom_call.1} parent=5 // pred_fallthru
      _
    %p646 = scmp.le.s32.totalorder 2, %s13
    // Predicated region
    $region53: #{tpu_custom_call.1} parent=5 // pred_check
      %p647 = pneg %p646
    $region54: #{tpu_custom_call.1} parent=5 // pred_check_branch
      %649 = sbr.rel (%p647) target = $region56
    $region55: #{tpu_custom_call.1} parent=5 // pred_region
      %s650 = ssub.s32 %s13, 2
      // Predicated region
      $region57: #{tpu_custom_call.1} parent=55 // pred_check
        %p651 = pneg %p194
      $region58: #{tpu_custom_call.1} parent=55 // pred_check_branch
        %653 = sbr.rel (%p651) target = $region60
      $region59: #{tpu_custom_call.1} parent=55 // pred_region
        %p654 = scmp.lt.s32.totalorder %s19, 1
        %s655 = scalar_select %p654, %s19, 1
        %s656 = smul.addr %s655, 4
        %s657 = smul.addr %s656, 8
        %s658 = scalar_lea.vmem %s7, %s657
      $region60: #{tpu_custom_call.1} parent=55 // pred_fallthru
        _
    $region56: #{tpu_custom_call.1} parent=5 // pred_fallthru
      _
  $region6: #{tpu_custom_call.1} parent=0 // loop_footer
    %s17 = sadd.s32 1, %s13
  $region7: #{tpu_custom_call.1} parent=0 // loop_footer_branch
    %12 = sbr.rel target = $region3
  $region8: #{tpu_custom_call.1} parent=0 // loop_exit
    _

</llo_original>
